<compile_context>
chip_gen: v7x
topology: tpu7x:2x2x1
jax: 0.10.0
libtpu: 0.0.40
codegen_flags: <defaults>
</compile_context>

<pallas_src>
import jax
import jax.numpy as jnp
from jax import lax
from jax.experimental import pallas as pl
from jax.experimental.pallas import tpu as pltpu


def _pair(v):
    if isinstance(v, (tuple, list)):
        return int(v[0]), int(v[1])
    return int(v), int(v)


def _round_up(a, b):
    return -(-a // b) * b


# ---------------------------------------------------------------------------
# Glue: coord-conv channels (pure data layout, matches the torch loops)
# ---------------------------------------------------------------------------
def add_coord_channels(x):
    # coord_info[:,0,i,:] = i / H ; coord_info[:,1,:,i] = i / W
    n, _, h, w = x.shape
    row = (jnp.arange(h, dtype=x.dtype) / h)[None, None, :, None]
    col = (jnp.arange(w, dtype=x.dtype) / w)[None, None, None, :]
    row = jnp.broadcast_to(row, (n, 1, h, w))
    col = jnp.broadcast_to(col, (n, 1, h, w))
    return jnp.concatenate([x, row, col], axis=1)


# ---------------------------------------------------------------------------
# Glue: spectral normalization of the ConvTranspose2d weight
# (PyTorch spectral_norm on ConvTranspose2d uses dim=1, i.e. C_out rows).
# TODO(synk): torch keeps persistent u/v buffers across calls; this stateless
#             power iteration is not bit-identical to torch's spectral_norm.
# ---------------------------------------------------------------------------
def spectral_normalize(weight, key, n_power_iterations=1, eps=1e-12):
    c_in, c_out, kh, kw = weight.shape
    w_mat = jnp.transpose(weight, (1, 0, 2, 3)).reshape(c_out, -1)
    u = jax.random.normal(key, (c_out,), weight.dtype)
    u = u / (jnp.linalg.norm(u) + eps)
    v = None
    for _ in range(n_power_iterations):
        v = w_mat.T @ u
        v = v / (jnp.linalg.norm(v) + eps)
        u = w_mat @ v
        u = u / (jnp.linalg.norm(u) + eps)
    sigma = u @ (w_mat @ v)
    return weight / sigma


# ---------------------------------------------------------------------------
# Pallas kernel: one fused MXU contraction per pixel tile.
#   w_ref:    (M, K)   phase-stacked weights (M = sH*sW*C_out), bf16
#   cols_ref: (K, TP)  shared union-tap patch matrix, TP output pixels on lanes
#   b_ref:    (M, 1)   phase-tiled bias, f32
#   o_ref:    (M, TP)  lane-dense output tile
# ---------------------------------------------------------------------------
def _convt_kernel(w_ref, cols_ref, b_ref, o_ref):
    acc = jnp.dot(w_ref[...], cols_ref[...], preferred_element_type=jnp.float32)
    o_ref[...] = (acc + b_ref[...]).astype(o_ref.dtype)


def _choose_pixel_tile(np_total, k_pad, m_all, fixed_bytes):
    """Lane tile (multiple of 128), sized from a conservative VMEM budget."""
    budget = 16 * 1024 * 1024 - 2 * fixed_bytes   # fits default scoped VMEM everywhere
    budget = max(budget, 2 * 1024 * 1024)
    per_lane = 2 * (k_pad * 2 + m_all * 4)        # double-buffered bf16 cols + f32 out
    tp = max(128, min(4096, (budget // per_lane) // 128 * 128))
    # keep >= 2 grid steps when the pixel axis allows it (v7x has 2 TensorCores)
    half = _round_up(-(-np_total // 2), 128)
    return min(tp, max(128, half))


def conv_transpose2d_pallas(x, weight, bias, stride, padding):
    """x: (N, C_in, H, W) NCHW; weight: (C_in, C_out, kH, kW); bias: (C_out,)."""
    N, C_in, H, W = x.shape
    wc_in, C_out, kH, kW = weight.shape
    assert wc_in == C_in
    sH, sW = _pair(stride)
    pH, pW = _pair(padding)

    # TODO(synk): output_padding is not exposed by the pygan module (always 0).
    H_out = (H - 1) * sH - 2 * pH + kH
    W_out = (W - 1) * sW - 2 * pW + kW

    # --- sub-pixel phase decomposition (pure trace-time index math) ---------
    # out[n, co, fh + sH*oh', fw + sW*ow'] =
    #   bias[co] + sum_{dh,dw,ci} weight[ci, co, fh+pH-sH*dh, fw+pW-sW*dw]
    #                           * x[n, ci, oh'+dh, ow'+dw]        (zero-padded x)
    # Union tap offsets shared by all phases, so ONE patch matrix serves every
    # phase and the per-phase weights stack along the MXU M dimension.
    def _offsets(s, p, k):
        offs = sorted({(f + p - kk) // s
                       for f in range(s) for kk in range(k)
                       if (kk - f - p) % s == 0})
        return offs if offs else [0]

    D_h = _offsets(sH, pH, kH)
    D_w = _offsets(sW, pW, kW)

    Hc = -(-H_out // sH)                 # coarse (per-phase) output rows
    Wc = -(-W_out // sW)
    n_ph = sH * sW
    T = len(D_h) * len(D_w)
    K = T * C_in
    M = n_ph * C_out

    # --- shared union-tap patch matrix (bf16) from the ORIGINAL input --------
    pad_t = max(0, -min(D_h))
    pad_b = max(0, Hc - 1 + max(D_h) - (H - 1))
    pad_l = max(0, -min(D_w))
    pad_r = max(0, Wc - 1 + max(D_w) - (W - 1))
    xq = x.astype(jnp.bfloat16)
    x_pad = jnp.pad(xq, ((0, 0), (0, 0), (pad_t, pad_b), (pad_l, pad_r)))

    taps = []
    for dh in D_h:
        for dw in D_w:
            rs, cs = dh + pad_t, dw + pad_l
            taps.append(x_pad[:, :, rs:rs + Hc, cs:cs + Wc])
    patch = jnp.stack(taps, axis=1)                       # (N, T, C_in, Hc, Wc)
    cols = patch.reshape(N, K, Hc * Wc)
    cols = jnp.transpose(cols, (1, 0, 2)).reshape(K, N * Hc * Wc)  # batch folded

    # --- phase weights stacked along M (bf16), same K ordering as cols -------
    wq = weight.astype(jnp.bfloat16)
    zero_tap = jnp.zeros((C_out, C_in), jnp.bfloat16)
    rows = []
    for fh in range(sH):
        for fw in range(sW):
            blocks = []
            for dh in D_h:
                kh = fh + pH - sH * dh
                for dw in D_w:
                    kw_ = fw + pW - sW * dw
                    if 0 <= kh < kH and 0 <= kw_ < kW:
                        blocks.append(wq[:, :, kh, kw_].T)     # (C_out, C_in)
                    else:
                        blocks.append(zero_tap)                # tap unused by phase
            rows.append(jnp.concatenate(blocks, axis=1))       # (C_out, K)
    w_all = jnp.concatenate(rows, axis=0)                      # (M, K)
    b_all = jnp.tile(bias.astype(jnp.float32), n_ph).reshape(M, 1)

    # --- pad to TPU-friendly tiles -------------------------------------------
    K_pad = _round_up(K, 16)                      # bf16 sublane packing
    NP = N * Hc * Wc
    TP = _choose_pixel_tile(NP, K_pad, M, fixed_bytes=M * K_pad * 2 + M * 4)
    NP_pad = _round_up(NP, TP)
    cols = jnp.pad(cols, ((0, K_pad - K), (0, NP_pad - NP)))
    w_all = jnp.pad(w_all, ((0, 0), (0, K_pad - K)))

    grid = (NP_pad // TP,)
    cost = pl.CostEstimate(
        flops=2 * M * K_pad * NP_pad,
        transcendentals=0,
        bytes_accessed=(w_all.size * 2 + cols.size * 2 + b_all.size * 4
                        + M * NP_pad * 4))

    out_flat = pl.pallas_call(
        _convt_kernel,
        out_shape=jax.ShapeDtypeStruct((M, NP_pad), x.dtype),
        grid=grid,
        in_specs=[
            pl.BlockSpec((M, K_pad), lambda t: (0, 0)),
            pl.BlockSpec((K_pad, TP), lambda t: (0, t)),
            pl.BlockSpec((M, 1), lambda t: (0, 0)),
        ],
        out_specs=pl.BlockSpec((M, TP), lambda t: (0, t)),
        compiler_params=pltpu.CompilerParams(
            dimension_semantics=("parallel",),
            vmem_limit_bytes=32 * 1024 * 1024),
        cost_estimate=cost,
    )(w_all, cols, b_all)

    # --- un-fold phases / batch (pure layout glue) ----------------------------
    if H_out % sH == 0 and W_out % sW == 0:
        out6 = out_flat[:, :NP].reshape(sH, sW, C_out, N, Hc, Wc)
        out = jnp.transpose(out6, (3, 2, 4, 0, 5, 1)).reshape(
            N, C_out, H_out, W_out)
    else:
        out = jnp.zeros((N, C_out, H_out, W_out), x.dtype)
        f = 0
        for fh in range(sH):
            for fw in range(sW):
                hf = -(-(H_out - fh) // sH)
                wf = -(-(W_out - fw) // sW)
                blk = out_flat[f * C_out:(f + 1) * C_out, :NP]
                blk = blk.reshape(C_out, N, Hc, Wc)[:, :, :hf, :wf]
                out = out.at[:, :, fh::sH, fw::sW].set(
                    jnp.transpose(blk, (1, 0, 2, 3)))
                f += 1
    return out


# ---------------------------------------------------------------------------
# Module-equivalent wrapper
# ---------------------------------------------------------------------------
def conv_transpose2d_module(x, weight, bias, stride, padding,
                            spec_norm=False, coord_conv=False, sn_key=None):
    if coord_conv:
        x = add_coord_channels(x)
    if spec_norm:
        weight = spectral_normalize(weight, sn_key)
    return conv_transpose2d_pallas(x, weight, bias, stride, padding)


# ---------------------------------------------------------------------------
# Pure-JAX reference (lax.conv_general_dilated) for validation
# ---------------------------------------------------------------------------
def ref_conv_transpose2d(x, weight, bias, stride, padding):
    _, _, kH, kW = weight.shape
    sH, sW = _pair(stride)
    pH, pW = _pair(padding)
    w = jnp.transpose(weight, (1, 0, 2, 3))[:, :, ::-1, ::-1]  # (C_out, C_in, kH, kW)
    out = lax.conv_general_dilated(
        x, w, window_strides=(1, 1),
        padding=[(kH - 1 - pH, kH - 1 - pH),
                 (kW - 1 - pW, kW - 1 - pW)],
        lhs_dilation=(sH, sW),
        dimension_numbers=('NCHW', 'OIHW', 'NCHW'),
        precision=lax.Precision.HIGHEST)
    return out + bias[None, :, None, None]


if __name__ == "__main__":
    # ConvTranspose2d(in_channels=4, out_channels=8, size=4, stride=2,
    #                 padding=1, spec_norm=False, coord_conv=True)
    batch, in_channels, out_channels = 2, 4, 8
    size, stride, padding = 4, 2, 1
    H = W = 16
    coord_conv = True
    spec_norm = False

    eff_in = in_channels + (2 if coord_conv else 0)

    key = jax.random.PRNGKey(0)
    kx, kw, kb, ku = jax.random.split(key, 4)

    x = jax.random.normal(kx, (batch, in_channels, H, W), jnp.float32)

    # deterministic parameter init (PyTorch-style uniform bounds)
    fan = out_channels * size * size
    bound = 1.0 / jnp.sqrt(jnp.float32(fan))
    weight = jax.random.uniform(kw, (eff_in, out_channels, size, size),
                                jnp.float32, -bound, bound)
    bias = jax.random.uniform(kb, (out_channels,), jnp.float32, -bound, bound)

    out = conv_transpose2d_module(x, weight, bias, stride, padding,
                                  spec_norm=spec_norm, coord_conv=coord_conv,
                                  sn_key=ku)
    out = jax.block_until_ready(out)

    # validate against the full-f32 pure-JAX reference (kernel uses bf16
    # operands with f32 accumulation, hence the relaxed tolerance)
    x_ref_in = add_coord_channels(x) if coord_conv else x
    w_ref_in = spectral_normalize(weight, ku) if spec_norm else weight
    ref = ref_conv_transpose2d(x_ref_in, w_ref_in, bias, stride, padding)
    ref = jax.block_until_ready(ref)

    H_out = (H - 1) * stride - 2 * padding + size
    W_out = (W - 1) * stride - 2 * padding + size
    assert out.shape == (batch, out_channels, H_out, W_out), out.shape
    assert jnp.allclose(out, ref, atol=5e-2, rtol=5e-2), \
        float(jnp.max(jnp.abs(out - ref)))

    print("KERNEL_OK")
</pallas_src>

<mosaic_0001>
module attributes {stable_mosaic.version = 11 : i64} {
  func.func @_convt_kernel(%arg0: i32, %arg1: memref<32x64xbf16, #tpu.memory_space<vmem>>, %arg2: memref<64x256xbf16, #tpu.memory_space<vmem>>, %arg3: memref<32x1xf32, #tpu.memory_space<vmem>>, %arg4: memref<32x256xf32, #tpu.memory_space<vmem>>) attributes {dimension_semantics = [#tpu.dimension_semantics<parallel>], iteration_bounds = array<i64: 2>, scalar_prefetch = 0 : i64, scratch_operands = 0 : i64, tpu.core_type = #tpu.core_type<tc>, window_params = [{pipeline_mode = #tpu.pipeline_mode<synchronous>, transform_indices = @transform_0, window_bounds = array<i64: 32, 64>}, {transform_indices = @transform_1, window_bounds = array<i64: 64, 256>}, {pipeline_mode = #tpu.pipeline_mode<synchronous>, transform_indices = @transform_2, window_bounds = array<i64: 32, 1>}, {transform_indices = @transform_3, window_bounds = array<i64: 32, 256>}]} {
    %c0 = arith.constant 0 : index
    %c0_0 = arith.constant 0 : index
    %0 = vector.load %arg1[%c0, %c0_0] : memref<32x64xbf16, #tpu.memory_space<vmem>>, vector<32x64xbf16>
    %c0_1 = arith.constant 0 : index
    %c0_2 = arith.constant 0 : index
    %1 = vector.load %arg2[%c0_1, %c0_2] : memref<64x256xbf16, #tpu.memory_space<vmem>>, vector<64x256xbf16>
    %cst = arith.constant dense<0.000000e+00> : vector<32x256xf32>
    %2 = tpu.matmul %0, %1, %cst {dimension_numbers = #tpu.dot_dimension_numbers<[1], [0], [0], [1], [0, 0, 1, 1], [], []>} : vector<32x64xbf16>, vector<64x256xbf16>, vector<32x256xf32> -> vector<32x256xf32>
    %c0_3 = arith.constant 0 : index
    %c0_4 = arith.constant 0 : index
    %3 = vector.load %arg3[%c0_3, %c0_4] : memref<32x1xf32, #tpu.memory_space<vmem>>, vector<32x1xf32>
    %4 = vector.broadcast %3 : vector<32x1xf32> to vector<32x256xf32>
    %5 = arith.addf %2, %4 : vector<32x256xf32>
    %c0_5 = arith.constant 0 : index
    %c0_6 = arith.constant 0 : index
    %6 = vector.load %arg4[%c0_5, %c0_6] : memref<32x256xf32, #tpu.memory_space<vmem>>, vector<32x256xf32>
    tpu.vector_store %arg4[%c0_5, %c0_6], %5 {strides = array<i32>} : memref<32x256xf32, #tpu.memory_space<vmem>>, vector<32x256xf32>,
    return
  }
  func.func @transform_0(%arg0: i32) -> (i32, i32) {
    %c0_i32 = arith.constant 0 : i32
    %c0_i32_0 = arith.constant 0 : i32
    %c0_i32_1 = arith.constant 0 : i32
    return %c0_i32, %c0_i32_0 : i32, i32
  }
  func.func @transform_1(%arg0: i32) -> (i32, i32) {
    %c0_i32 = arith.constant 0 : i32
    %c0_i32_0 = arith.constant 0 : i32
    return %c0_i32, %arg0 : i32, i32
  }
  func.func @transform_2(%arg0: i32) -> (i32, i32) {
    %c0_i32 = arith.constant 0 : i32
    %c0_i32_0 = arith.constant 0 : i32
    %c0_i32_1 = arith.constant 0 : i32
    return %c0_i32, %c0_i32_0 : i32, i32
  }
  func.func @transform_3(%arg0: i32) -> (i32, i32) {
    %c0_i32 = arith.constant 0 : i32
    %c0_i32_0 = arith.constant 0 : i32
    return %c0_i32, %arg0 : i32, i32
  }
}

</mosaic_0001>

<llo_original>
// kernel: tpu_custom_call.1
$region0: #{tpu_custom_call.1}
  #allocation0 [shape = 'u32[]', space=smem, size = 0x4, offset = 0x4, fixed_abs, tag = 'smem constant byte address 0x4 - core index']
  #allocation1 [shape = 'u32[144,128]{1,0:T(1,128)}', space=vmem, size = 0x12000, scoped, tag = 'internal scratch']
  %s0 = inlined_call_operand.vmem [shape: bf16[32,64], index: 0, kind: input, shape index: {}]
  %s1 = inlined_call_operand.hbm [shape: bf16[64,512], index: 1, kind: input, shape index: {}]
  %s2 = inlined_call_operand.vmem [shape: f32[32,1], index: 2, kind: input, shape index: {}]
  %s3 = inlined_call_operand.hbm [shape: f32[32,512], index: 3, kind: output, shape index: {}]
  %s4 = sld [smem:[#allocation0]]
  $region49: #{tpu_custom_call.1} parent=0
    _
  %s6 = ssub.s32 1, %s4
  %s7 = scalar_select 0, %s6, %s4
  $region1: #{tpu_custom_call.1} parent=0
    #allocation2 [shape = 'u8[65536]{0}', space=vmem, size = 0x10000, scoped, tag = 'input window, operand 1']
    #allocation3 [shape = 's32[2]{0}', space=sflag, size = 0x8, scoped, tag = 'scoped memory for tpu_custom_call.1']
    #allocation4 [shape = 's32[2]{0}', space=sflag, size = 0x8, scoped, tag = 'scoped memory for tpu_custom_call.1']
    #allocation5 [shape = 'u8[65536]{0}', space=vmem, size = 0x10000, scoped, tag = 'output window, operand 0']
    %8 = vsyncpa [#allocation3], 0
    %s9 = scalar_lea.sflag [#allocation3], 1
    %10 = vsyncpa %s9, 0
    %11 = vsyncpa [#allocation4], 0
    %s12 = scalar_lea.sflag [#allocation4], 1
    %13 = vsyncpa %s12, 0
    loop: start=0, step=1, limit=4
    $region2: #{tpu_custom_call.1} parent=1 // loop_pre_header
      _
    $region3: #{tpu_custom_call.1} parent=1 // loop_header
      %s15 = sphi 0, %s19
      %p16 = scmp.ge.s32.totalorder %s15, 4
      %s23 = sphi 0, %s23
      %s25 = sphi 0, %s23
      %s26 = sphi 0, %s25
      %s40 = sphi 0, %s26
      %s46 = sphi 0, %s48
      %s49 = sphi 0, %s46
      %s50 = sphi 0, %s49
      %s66 = sphi 0, %s50
      %s70 = sphi 0, %s70
      %s72 = sphi 0, %s70
      %s73 = sphi 0, %s72
      %s87 = sphi 0, %s73
      %s93 = sphi 0, %s95
      %s96 = sphi 0, %s93
      %s97 = sphi 0, %s96
      %s113 = sphi 0, %s97
    $region4: #{tpu_custom_call.1} parent=1 // loop_header_branch
      %18 = sbr.rel (%p16) target = $region8
    $region5: #{tpu_custom_call.1} parent=1 // loop_body
      %s20 = ssub.s32 %s15, 1
      %s21 = ssub.s32 %s15, 2
      %s22 = sadd.s32 %s15, 1
      %s24 = sadd.s32 %s23, 1
      %p27 = scmp.eq.s32.totalorder %s15, 1
      %p28 = scmp.ne.s32.totalorder %s23, %s25
      %p29 = scmp.eq.s32.totalorder %s15, 0
      %p30 = por %p28, %p29
      %p31 = scmp.ne.s32.totalorder %s23, %s25
      %p32 = scmp.eq.s32.totalorder %s20, 1
      %p33 = por %p31, %p32
      %p34 = scmp.ne.s32.totalorder %s25, %s26
      %p35 = scmp.eq.s32.totalorder %s20, 0
      %p36 = por %p34, %p35
      %p37 = scmp.ne.s32.totalorder %s25, %s26
      %p38 = scmp.eq.s32.totalorder %s21, 1
      %p39 = por %p37, %p38
      %p41 = scmp.ne.s32.totalorder %s26, %s40
      %p42 = scmp.eq.s32.totalorder %s21, 0
      %p43 = por %p41, %p42
      %s44 = ssub.s32 %s15, %s22
      %p45 = scmp.eq.s32.totalorder %s44, 0
      %s47 = sadd.s32 %s46, 1
      %s48 = scalar_select %p45, %s46, %s47
      %p51 = pneg %p45
      %p52 = scmp.eq.s32.totalorder %s15, 1
      %p53 = por %p51, %p52
      %p54 = scmp.ne.s32.totalorder %s46, %s49
      %p55 = scmp.eq.s32.totalorder %s15, 0
      %p56 = por %p54, %p55
      %p57 = scmp.ne.s32.totalorder %s46, %s49
      %p58 = scmp.eq.s32.totalorder %s20, 1
      %p59 = por %p57, %p58
      %p60 = scmp.ne.s32.totalorder %s49, %s50
      %p61 = scmp.eq.s32.totalorder %s20, 0
      %p62 = por %p60, %p61
      %p63 = scmp.ne.s32.totalorder %s49, %s50
      %p64 = scmp.eq.s32.totalorder %s21, 1
      %p65 = por %p63, %p64
      %p67 = scmp.ne.s32.totalorder %s50, %s66
      %p68 = scmp.eq.s32.totalorder %s21, 0
      %p69 = por %p67, %p68
      %s71 = sadd.s32 %s70, 1
      %p74 = scmp.eq.s32.totalorder %s15, 1
      %p75 = scmp.ne.s32.totalorder %s70, %s72
      %p76 = scmp.eq.s32.totalorder %s15, 0
      %p77 = por %p75, %p76
      %p78 = scmp.ne.s32.totalorder %s70, %s72
      %p79 = scmp.eq.s32.totalorder %s20, 1
      %p80 = por %p78, %p79
      %p81 = scmp.ne.s32.totalorder %s72, %s73
      %p82 = scmp.eq.s32.totalorder %s20, 0
      %p83 = por %p81, %p82
      %p84 = scmp.ne.s32.totalorder %s72, %s73
      %p85 = scmp.eq.s32.totalorder %s21, 1
      %p86 = por %p84, %p85
      %p88 = scmp.ne.s32.totalorder %s73, %s87
      %p89 = scmp.eq.s32.totalorder %s21, 0
      %p90 = por %p88, %p89
      %s91 = ssub.s32 %s15, %s22
      %p92 = scmp.eq.s32.totalorder %s91, 0
      %s94 = sadd.s32 %s93, 1
      %s95 = scalar_select %p92, %s93, %s94
      %p98 = pneg %p92
      %p99 = scmp.eq.s32.totalorder %s15, 1
      %p100 = por %p98, %p99
      %p101 = scmp.ne.s32.totalorder %s93, %s96
      %p102 = scmp.eq.s32.totalorder %s15, 0
      %p103 = por %p101, %p102
      %p104 = scmp.ne.s32.totalorder %s93, %s96
      %p105 = scmp.eq.s32.totalorder %s20, 1
      %p106 = por %p104, %p105
      %p107 = scmp.ne.s32.totalorder %s96, %s97
      %p108 = scmp.eq.s32.totalorder %s20, 0
      %p109 = por %p107, %p108
      %p110 = scmp.ne.s32.totalorder %s96, %s97
      %p111 = scmp.eq.s32.totalorder %s21, 1
      %p112 = por %p110, %p111
      %p114 = scmp.ne.s32.totalorder %s97, %s113
      %p115 = scmp.eq.s32.totalorder %s21, 0
      %p116 = por %p114, %p115
      %p117 = scmp.le.s32.totalorder 1, %s15
      %p118 = scmp.lt.s32.totalorder %s15, 3
      %p119 = pnand %p117, %p118
      %p120 = pneg %p119
      // Predicated region
      $region9: #{tpu_custom_call.1} parent=5 // pred_check
        _
      $region10: #{tpu_custom_call.1} parent=5 // pred_check_branch
        %122 = sbr.rel (%p119) target = $region12
      $region11: #{tpu_custom_call.1} parent=5 // pred_region
        %s123 = ssub.s32 %s15, 1
        // Predicated region
        $region13: #{tpu_custom_call.1} parent=11 // pred_check
          %p124 = pneg %p36
        $region14: #{tpu_custom_call.1} parent=11 // pred_check_branch
          %126 = sbr.rel (%p124) target = $region16
        $region15: #{tpu_custom_call.1} parent=11 // pred_region
          _
        $region16: #{tpu_custom_call.1} parent=11 // pred_fallthru
          _
        // Predicated region
        $region17: #{tpu_custom_call.1} parent=11 // pred_check
          %p127 = pneg %p83
        $region18: #{tpu_custom_call.1} parent=11 // pred_check_branch
          %129 = sbr.rel (%p127) target = $region20
        $region19: #{tpu_custom_call.1} parent=11 // pred_region
          _
        $region20: #{tpu_custom_call.1} parent=11 // pred_fallthru
          _
      $region12: #{tpu_custom_call.1} parent=5 // pred_fallthru
        _
      %p130 = scmp.lt.s32.totalorder %s15, 2
      // Predicated region
      $region21: #{tpu_custom_call.1} parent=5 // pred_check
        %p131 = pneg %p130
      $region22: #{tpu_custom_call.1} parent=5 // pred_check_branch
        %133 = sbr.rel (%p131) target = $region24
      $region23: #{tpu_custom_call.1} parent=5 // pred_region
        // Predicated region
        $region25: #{tpu_custom_call.1} parent=23 // pred_check
          %p134 = pneg %p56
        $region26: #{tpu_custom_call.1} parent=23 // pred_check_branch
          %136 = sbr.rel (%p134) target = $region28
        $region27: #{tpu_custom_call.1} parent=23 // pred_region
          %s137 = sand.u32 %s46, 1
          %s138 = scalar_lea.sflag [#allocation3], %s137
          %s139 = sand.u32 %s46, 1
          %s140 = smul.addr %s139, 64
          %s141 = scalar_lea.vmem [#allocation2], %s140
          %s142 = smul.u32 2, %s15
          %s144 = ssub.s32 1024, 1024
          %145 = vsyncadd %s138, %s144
          %s146 = smul.addr %s142, 64
          %s147 = scalar_lea.hbm %s1, %s146
          %s148 = sshll.u32 %s141, 4
          %s149 = int_to_ptr.vmem [resolvable:$true] %s148
          %154 = dma.hbm_to_vmem [thread:$0]  %s147, 1024, %s149, %s138, 256, 128, 8
        $region28: #{tpu_custom_call.1} parent=23 // pred_fallthru
          _
      $region24: #{tpu_custom_call.1} parent=5 // pred_fallthru
        _
      %p155 = scmp.le.s32.totalorder 1, %s15
      %p156 = scmp.lt.s32.totalorder %s15, 3
      %p157 = pnand %p155, %p156
      %p158 = pneg %p157
      // Predicated region
      $region29: #{tpu_custom_call.1} parent=5 // pred_check
        _
      $region30: #{tpu_custom_call.1} parent=5 // pred_check_branch
        %160 = sbr.rel (%p157) target = $region32
      $region31: #{tpu_custom_call.1} parent=5 // pred_region
        %s161 = ssub.s32 %s15, 1
        %s162 = sand.u32 %s49, 1
        %s163 = scalar_lea.sflag [#allocation3], %s162
        %s164 = sand.u32 %s49, 1
        %s165 = smul.addr %s164, 64
        %s166 = scalar_lea.vmem [#allocation2], %s165
        // Predicated region
        $region33: #{tpu_custom_call.1} parent=31 // pred_check
          %p167 = pneg %p62
        $region34: #{tpu_custom_call.1} parent=31 // pred_check_branch
          %169 = sbr.rel (%p167) target = $region36
        $region35: #{tpu_custom_call.1} parent=31 // pred_region
          %170 = dma.done %s163, 1024
        $region36: #{tpu_custom_call.1} parent=31 // pred_fallthru
          _
        %p171 = pneg %p36
        %p172 = pneg %p33
        %s173 = sand.u32 %s49, 1
        %s174 = scalar_lea.sflag [#allocation3], %s173
        %s175 = sand.u32 %s49, 1
        %s176 = smul.addr %s175, 64
        %s177 = scalar_lea.vmem [#allocation2], %s176
        %p178 = pneg %p62
        %p179 = pneg %p59
        %p180 = pneg %p83
        %p181 = pneg %p80
        %p182 = pneg %p109
        %p183 = pneg %p106
        %s184 = sand.u32 %s96, 1
        %s185 = scalar_lea.sflag [#allocation4], %s184
        %s186 = sand.u32 %s96, 1
        %s187 = smul.addr %s186, 64
        %s188 = scalar_lea.vmem [#allocation5], %s187
        %s189 = smul.u32 2, %s20
        %s190 = smul.u32 2, %s20
        %v192 = vld [vmem:[%s0] sm:$0xf]
        %v193 = vld [vmem:[%s0 + $0x4] sm:$0xf]
        %v194 = vld [vmem:[%s0 + $0x8] sm:$0xf]
        %v195 = vld [vmem:[%s0 + $0xc] sm:$0xf]
        %v196 = vld [vmem:[%s166] sm:$0xff]
        %v197 = vld [vmem:[%s166 + $0x8] sm:$0xff]
        %v198 = vld [vmem:[%s166 + $0x10] sm:$0xff]
        %v199 = vld [vmem:[%s166 + $0x18] sm:$0xff]
        %v200 = vld [vmem:[%s166 + $0x20] sm:$0xff]
        %v201 = vld [vmem:[%s166 + $0x28] sm:$0xff]
        %v202 = vld [vmem:[%s166 + $0x30] sm:$0xff]
        %v203 = vld [vmem:[%s166 + $0x38] sm:$0xff]
        %v204 = vld [vmem:[%s2] sm:$0xff]
        %v205 = vld [vmem:[%s2 + $0x8] sm:$0xff]
        %v206 = vld [vmem:[%s2 + $0x10] sm:$0xff]
        %v207 = vld [vmem:[%s2 + $0x18] sm:$0xff]
        %209 = vset.pattern.permute.xlu0 0
        %210 = vperm.xlu0 %209, %v204
        %v211 = vpop.permute.xlu0 %210
        %214 = vset.pattern.permute.xlu0 0
        %215 = vperm.xlu0 %214, %v205
        %v216 = vpop.permute.xlu0 %215
        %219 = vset.pattern.permute.xlu0 0
        %220 = vperm.xlu0 %219, %v206
        %v221 = vpop.permute.xlu0 %220
        %224 = vset.pattern.permute.xlu0 0
        %225 = vperm.xlu0 %224, %v207
        %v226 = vpop.permute.xlu0 %225
        %v232 = vunpack.c.l.b16 %v192
        %v233 = vunpack.c.l.b16 %v193
        %v234 = vunpack.c.l.b16 %v194
        %v235 = vunpack.c.l.b16 %v195
        %v236 = vpack.c.b16 %v233, %v232
        %v237 = vpack.c.b16 %v235, %v234
        %v246 = vunpack.c.l.b16 %v196
        %v247 = vunpack.c.h.b16 %v196
        %v248 = vunpack.c.l.b16 %v197
        %v249 = vunpack.c.h.b16 %v197
        %v250 = vunpack.c.l.b16 %v198
        %v251 = vunpack.c.h.b16 %v198
        %v252 = vunpack.c.l.b16 %v199
        %v253 = vunpack.c.h.b16 %v199
        %v254 = vunpack.c.l.b16 %v200
        %v255 = vunpack.c.h.b16 %v200
        %v256 = vunpack.c.l.b16 %v201
        %v257 = vunpack.c.h.b16 %v201
        %v258 = vunpack.c.l.b16 %v202
        %v259 = vunpack.c.h.b16 %v202
        %v260 = vunpack.c.l.b16 %v203
        %v261 = vunpack.c.h.b16 %v203
        %v262 = vpack.c.b16 %v248, %v246
        %v263 = vpack.c.b16 %v249, %v247
        %v264 = vpack.c.b16 %v252, %v250
        %v265 = vpack.c.b16 %v253, %v251
        %v266 = vpack.c.b16 %v256, %v254
        %v267 = vpack.c.b16 %v257, %v255
        %v268 = vpack.c.b16 %v260, %v258
        %v269 = vpack.c.b16 %v261, %v259
        %vm278 = vcmask 523264
        %v280 = vsel %vm278, %v236, 0
        %v283 = vsel %vm278, %v237, 0
        %285 = vmatprep.subr.bf16.mxu0 %v263
        %286 = vmatpush1.bf16.msra.mxu0 %v262
        %287 = vmatprep.subr.bf16.mxu0 %v265
        %288 = vmatpush1.bf16.msra.mxu0 %v264
        %289 = vmatprep.subr.bf16.mxu0 %v267
        %290 = vmatpush1.bf16.msra.mxu0 %v266
        %291 = vmatprep.subr.bf16.mxu0 %v269
        %292 = vmatpush1.bf16.msra.mxu0 %v268
        %293 = vmatprep.subr.bf16.mxu0 0
        %294 = vmatpush1.bf16.msra.mxu0 0
        %295 = vmatprep.subr.bf16.mxu0 0
        %296 = vmatpush1.bf16.msra.mxu0 0
        %297 = vmatprep.subr.bf16.mxu0 0
        %298 = vmatpush1.bf16.msra.mxu0 0
        %299 = vmatprep.subr.bf16.mxu0 0
        %300 = vmatpush1.bf16.msra.mxu0 0
        %301 = vmatprep.subr.bf16.mxu0 0
        %302 = vmatpush1.bf16.msra.mxu0 0
        %303 = vmatprep.subr.bf16.mxu0 0
        %304 = vmatpush1.bf16.msra.mxu0 0
        %305 = vmatprep.subr.bf16.mxu0 0
        %306 = vmatpush1.bf16.msra.mxu0 0
        %307 = vmatprep.subr.bf16.mxu0 0
        %308 = vmatpush1.bf16.msra.mxu0 0
        %309 = vmatprep.subr.bf16.mxu0 0
        %310 = vmatpush1.bf16.msra.mxu0 0
        %311 = vmatprep.subr.bf16.mxu0 0
        %312 = vmatpush1.bf16.msra.mxu0 0
        %313 = vmatprep.subr.bf16.mxu0 0
        %314 = vmatpush1.bf16.msra.mxu0 0
        %315 = vmatprep.subr.bf16.mxu0 0
        %316 = vmatpush1.bf16.msra.mxu0 0
        %317 = vmatprep.mubr.bf16.mxu0 0
        %318 = vmatmul.mubr.bf16.gmra.mrb[0].mxu0 %v280
        %v319 = vpop.f32.mrb[0].mxu0
        %v320 = vadd.f32 %v211, %v319
        %v321 = vpop.f32.mrb[0].mxu0
        %v322 = vadd.f32 %v211, %v321
        %v323 = vpop.f32.mrb[0].mxu0
        %v324 = vadd.f32 %v216, %v323
        %v325 = vpop.f32.mrb[0].mxu0
        %v326 = vadd.f32 %v216, %v325
        %327 = vmatprep.mubr.bf16.mxu0 0
        %328 = vmatmul.mubr.bf16.gmra.mrb[0].mxu0 %v283
        %v329 = vpop.f32.mrb[0].mxu0
        %v330 = vadd.f32 %v221, %v329
        %v331 = vpop.f32.mrb[0].mxu0
        %v332 = vadd.f32 %v221, %v331
        %v333 = vpop.f32.mrb[0].mxu0
        %v334 = vadd.f32 %v226, %v333
        %v335 = vpop.f32.mrb[0].mxu0
        %v336 = vadd.f32 %v226, %v335
        %337 = vdwg.mxu0
        %338 = vst [vmem:[%s188] sm:$0xff] %v320
        %339 = vst [vmem:[%s188 + $0x8] sm:$0xff] %v322
        %340 = vst [vmem:[%s188 + $0x10] sm:$0xff] %v324
        %341 = vst [vmem:[%s188 + $0x18] sm:$0xff] %v326
        %342 = vst [vmem:[%s188 + $0x20] sm:$0xff] %v330
        %343 = vst [vmem:[%s188 + $0x28] sm:$0xff] %v332
        %344 = vst [vmem:[%s188 + $0x30] sm:$0xff] %v334
        %345 = vst [vmem:[%s188 + $0x38] sm:$0xff] %v336
        %s346 = sand.u32 %s96, 1
        %s347 = scalar_lea.sflag [#allocation4], %s346
        %s348 = sand.u32 %s96, 1
        %s349 = smul.addr %s348, 64
        %s350 = scalar_lea.vmem [#allocation5], %s349
        // Predicated region
        $region37: #{tpu_custom_call.1} parent=31 // pred_check
          %p351 = pneg %p106
        $region38: #{tpu_custom_call.1} parent=31 // pred_check_branch
          %353 = sbr.rel (%p351) target = $region40
        $region39: #{tpu_custom_call.1} parent=31 // pred_region
          %s354 = smul.u32 2, %s20
          %s356 = ssub.s32 1024, 1024
          %357 = vsyncadd %s347, %s356
          %s358 = smul.addr %s354, 128
          %s359 = scalar_lea.hbm %s3, %s358
          %s360 = sshll.u32 %s350, 4
          %s361 = int_to_ptr.vmem [resolvable:$true] %s360
          %366 = dma.vmem_to_hbm [thread:$0]  %s361, 1024, %s359, %s347, 256, 512, 16
        $region40: #{tpu_custom_call.1} parent=31 // pred_fallthru
          _
      $region32: #{tpu_custom_call.1} parent=5 // pred_fallthru
        _
      %p367 = scmp.le.s32.totalorder 2, %s15
      // Predicated region
      $region41: #{tpu_custom_call.1} parent=5 // pred_check
        %p368 = pneg %p367
      $region42: #{tpu_custom_call.1} parent=5 // pred_check_branch
        %370 = sbr.rel (%p368) target = $region44
      $region43: #{tpu_custom_call.1} parent=5 // pred_region
        %s371 = ssub.s32 %s15, 2
        // Predicated region
        $region45: #{tpu_custom_call.1} parent=43 // pred_check
          %p372 = pneg %p112
        $region46: #{tpu_custom_call.1} parent=43 // pred_check_branch
          %374 = sbr.rel (%p372) target = $region48
        $region47: #{tpu_custom_call.1} parent=43 // pred_region
          %s375 = sand.u32 %s97, 1
          %s376 = scalar_lea.sflag [#allocation4], %s375
          %s377 = sand.u32 %s97, 1
          %s378 = smul.addr %s377, 64
          %s379 = scalar_lea.vmem [#allocation5], %s378
          %380 = dma.done %s376, 1024
        $region48: #{tpu_custom_call.1} parent=43 // pred_fallthru
          _
      $region44: #{tpu_custom_call.1} parent=5 // pred_fallthru
        _
    $region6: #{tpu_custom_call.1} parent=1 // loop_footer
      %s19 = sadd.s32 1, %s15
    $region7: #{tpu_custom_call.1} parent=1 // loop_footer_branch
      %14 = sbr.rel target = $region3
    $region8: #{tpu_custom_call.1} parent=1 // loop_exit
      _
    %381 = vsyncpa [#allocation3], 1
    %s382 = scalar_lea.sflag [#allocation3], 1
    %383 = vsyncpa %s382, 1
    %384 = vsyncpa [#allocation4], 1
    %s385 = scalar_lea.sflag [#allocation4], 1
    %386 = vsyncpa %s385, 1

</llo_original>
